<compile_context>
chip_gen: v5e
topology: v5e:2x2
jax: 0.10.0
libtpu: 0.0.40
codegen_flags: <defaults>
</compile_context>

<pallas_src>
import functools
import math

import jax
import jax.numpy as jnp
from jax.experimental import pallas as pl
from jax.experimental.pallas import tpu as pltpu

LOG_STD_MAX = 2.0
LOG_STD_MIN = -20.0
_LOG2 = math.log(2.0)
_HALF_LOG_2PI = 0.5 * math.log(2.0 * math.pi)


def _round_up(x, m):
    return ((x + m - 1) // m) * m


def _softplus(x):
    # numerically stable softplus (safe squash-correction form from SpinningUp)
    return jnp.maximum(x, 0.0) + jnp.log1p(jnp.exp(-jnp.abs(x)))


# ----------------------------- Pallas kernel --------------------------------
def actor_kernel(act_limit, act_dim,
                 x_ref,
                 enc_w_ref, enc_b_ref,
                 w1_ref, b1_ref, w2_ref, b2_ref,
                 wh_ref, bh_ref,
                 out_ref):
    # Feature-major: batch in the lane dim.
    #   x_ref : (A + C + S, tb), rows [0:A] = eps, rows [A:] = [pooled; state]
    #   weights in (out, in) layout -> y = W @ x is a plain MXU matmul with N = tb.
    x = x_ref[...]                                       # (CSA, tb)
    eps = x[:act_dim, :]                                 # (A, tb)

    # Fused image-encoder head: tanh(W_enc @ [eps; pooled; state] + b).
    # (eps columns of W_enc are zero, so one matmul replaces the concat.)
    feat = jnp.tanh(
        jnp.dot(enc_w_ref[...], x, preferred_element_type=jnp.float32)
        + enc_b_ref[...])                                # (21, tb)

    # Actor trunk: mlp([21, h1, h2], act, act) -> every layer Linear + ReLU.
    h = jnp.maximum(
        jnp.dot(w1_ref[...], feat, preferred_element_type=jnp.float32) + b1_ref[...],
        0.0)
    h = jnp.maximum(
        jnp.dot(w2_ref[...], h, preferred_element_type=jnp.float32) + b2_ref[...],
        0.0)

    # Fused heads: rows [0:A] = mu, rows [A:2A] = log_std.
    heads = jnp.dot(wh_ref[...], h, preferred_element_type=jnp.float32) + bh_ref[...]
    mu = heads[:act_dim, :]
    log_std = jnp.clip(heads[act_dim:, :], LOG_STD_MIN, LOG_STD_MAX)
    std = jnp.exp(log_std)

    pi_pre = mu + std * eps                              # Normal(mu, std).rsample()

    # Gaussian log-prob ((pi_pre - mu)/std == eps) + tanh-squash correction,
    # summed over the action (sublane) axis -> lane-dense (1, tb).
    per_dim = (-0.5 * eps * eps - log_std - _HALF_LOG_2PI
               - 2.0 * (_LOG2 - pi_pre - _softplus(-2.0 * pi_pre)))
    logp = jnp.sum(per_dim, axis=0, keepdims=True)       # (1, tb)

    # Single packed lane-dense output slab: pi in rows 0..A-1, logp in row A.
    out_ref[:act_dim, :] = act_limit * jnp.tanh(pi_pre)
    out_ref[act_dim:act_dim + 1, :] = logp


# ------------------------------ Pallas wrapper -------------------------------
def squashed_gaussian_actor_pallas(pooled, state, eps, params, act_limit, *,
                                   tile_b=4096):
    """pooled:(B,C) state:(B,S) eps:(B,A) f32. Returns pi:(B,A), logp:(B,)."""
    B, C = pooled.shape
    S = state.shape[1]
    A = eps.shape[1]
    CSA = A + C + S
    F = params["enc_w"].shape[0]            # 21-dim encoder feature
    H1 = params["w1"].shape[0]
    H2 = params["w2"].shape[0]

    # Batch is the lane dim: pad to a multiple of 128 lanes only (not to a multiple
    # of the tile).  Keep >=2 grid steps when B is large enough so both v7x TCs work.
    B_pad = _round_up(B, 128)
    num_steps = max(pl.cdiv(B_pad, tile_b), 2 if B_pad >= 256 else 1)
    tb = _round_up(pl.cdiv(B_pad, num_steps), 128)
    B_final = tb * num_steps

    # One packed, feature-major input stream: rows = [eps; pooled; state].
    x = jnp.concatenate([eps, pooled, state], axis=1).T            # (CSA, B)
    x = jnp.pad(x, ((0, 0), (0, B_final - B)))

    # Weights in (out, in) layout; zero columns for the eps rows of the encoder.
    enc_w = jnp.concatenate([jnp.zeros((F, A), jnp.float32), params["enc_w"]], axis=1)
    enc_b = params["enc_b"][:, None]
    w1, b1 = params["w1"], params["b1"][:, None]
    w2, b2 = params["w2"], params["b2"][:, None]
    wh = jnp.concatenate([params["w_mu"], params["w_ls"]], axis=0)  # (2A, H2)
    bh = jnp.concatenate([params["b_mu"], params["b_ls"]], axis=0)[:, None]
    weights = (enc_w, enc_b, w1, b1, w2, b2, wh, bh)

    def const_spec(w):
        return pl.BlockSpec(w.shape, lambda i: (0,) * w.ndim)      # VMEM-resident

    flops = 2 * B_final * (CSA * F + F * H1 + H1 * H2 + H2 * 2 * A)
    transcendentals = B_final * (F + 4 * A)                # tanh feat + exp/softplus/tanh
    bytes_accessed = 4 * (B_final * (CSA + A + 1) + sum(int(w.size) for w in weights))

    kernel = functools.partial(actor_kernel, float(act_limit), A)

    out = pl.pallas_call(
        kernel,
        out_shape=jax.ShapeDtypeStruct((A + 1, B_final), jnp.float32),
        grid=(num_steps,),
        in_specs=[pl.BlockSpec((CSA, tb), lambda i: (0, i))]
                 + [const_spec(w) for w in weights],
        out_specs=pl.BlockSpec((A + 1, tb), lambda i: (0, i)),
        compiler_params=pltpu.CompilerParams(
            dimension_semantics=("parallel",),             # megacore split on v7x
            vmem_limit_bytes=32 * 1024 * 1024),            # bounded, v7x-safe
        cost_estimate=pl.CostEstimate(flops=flops,
                                      transcendentals=transcendentals,
                                      bytes_accessed=bytes_accessed),
    )(x, *weights)

    pi = out[:A, :B].T                                     # back to (B, A)
    logp = out[A, :B]
    return pi, logp


# --------------------------- parameter construction --------------------------
def _linear_init(key, fan_in, fan_out):
    """PyTorch nn.Linear-style uniform(-1/sqrt(fan_in), 1/sqrt(fan_in)), (out,in)."""
    kw, kb = jax.random.split(key)
    bound = 1.0 / math.sqrt(fan_in)
    w = jax.random.uniform(kw, (fan_out, fan_in), jnp.float32, -bound, bound)
    b = jax.random.uniform(kb, (fan_out,), jnp.float32, -bound, bound)
    return w, b


def make_actor_params(key, c, state_dim, act_dim, hidden_sizes):
    k = jax.random.split(key, 6)
    enc_w = jax.random.normal(k[0], (21, c + state_dim), jnp.float32) * 0.1
    enc_b = jax.random.normal(k[1], (21,), jnp.float32) * 0.1
    w1, b1 = _linear_init(k[2], 21, hidden_sizes[0])
    w2, b2 = _linear_init(k[3], hidden_sizes[0], hidden_sizes[1])
    w_mu, b_mu = _linear_init(k[4], hidden_sizes[1], act_dim)
    w_ls, b_ls = _linear_init(k[5], hidden_sizes[1], act_dim)
    return {"enc_w": enc_w, "enc_b": enc_b,
            "w1": w1, "b1": b1, "w2": w2, "b2": b2,
            "w_mu": w_mu, "b_mu": b_mu, "w_ls": w_ls, "b_ls": b_ls}


# ------------------------------- full forward --------------------------------
# TODO(synk): `image_encoder` is an external module not defined in core.py; stand-in
# is a channel mean-pool (plain JAX) whose linear+tanh head (producing the 21-dim
# feature implied by mlp([21, ...])) is fused into the Pallas kernel.
def squashed_gaussian_actor_forward(obs, params, act_limit, *, eps=None,
                                    deterministic=False, with_logprob=True):
    img, state = obs
    pooled = jnp.mean(img, axis=(2, 3))                    # (B, C)
    B = pooled.shape[0]
    A = params["w_mu"].shape[0]
    if deterministic or eps is None:
        eps = jnp.zeros((B, A), jnp.float32)               # rsample noise = 0 -> mu
    pi, logp = squashed_gaussian_actor_pallas(pooled, state, eps, params, act_limit)
    return pi, (logp if with_logprob else None)


# ------------------------------ pure-JAX reference ---------------------------
def actor_ref(obs, params, act_limit, eps):
    img, state = obs
    pooled = jnp.mean(img, axis=(2, 3))
    inp = jnp.concatenate([pooled, state], axis=1)
    feat = jnp.tanh(inp @ params["enc_w"].T + params["enc_b"])
    h = jnp.maximum(feat @ params["w1"].T + params["b1"], 0.0)
    h = jnp.maximum(h @ params["w2"].T + params["b2"], 0.0)
    mu = h @ params["w_mu"].T + params["b_mu"]
    log_std = jnp.clip(h @ params["w_ls"].T + params["b_ls"], LOG_STD_MIN, LOG_STD_MAX)
    std = jnp.exp(log_std)
    pi_pre = mu + std * eps
    logp = jnp.sum(-0.5 * ((pi_pre - mu) / std) ** 2 - log_std - _HALF_LOG_2PI, axis=-1)
    logp = logp - jnp.sum(2.0 * (_LOG2 - pi_pre - jax.nn.softplus(-2.0 * pi_pre)), axis=-1)
    return act_limit * jnp.tanh(pi_pre), logp


if __name__ == "__main__":
    key = jax.random.PRNGKey(0)
    k_img, k_state, k_eps, k_params = jax.random.split(key, 4)

    B, C, H, W = 8, 4, 16, 16       # small NCHW image observation
    STATE_DIM = 5                   # second observation component (obs[1])
    ACT_DIM = 6
    HIDDEN = (32, 32)
    ACT_LIMIT = 1.0

    img = jax.random.normal(k_img, (B, C, H, W), jnp.float32)
    state = jax.random.normal(k_state, (B, STATE_DIM), jnp.float32)
    eps = jax.random.normal(k_eps, (B, ACT_DIM), jnp.float32)   # rsample noise

    params = make_actor_params(k_params, C, STATE_DIM, ACT_DIM, HIDDEN)

    pi, logp = squashed_gaussian_actor_forward((img, state), params, ACT_LIMIT, eps=eps)
    pi = jax.block_until_ready(pi)
    logp = jax.block_until_ready(logp)
    assert pi.shape == (B, ACT_DIM), pi.shape
    assert logp.shape == (B,), logp.shape

    # correctness check vs pure-JAX reference (same eps)
    pi_ref, logp_ref = actor_ref((img, state), params, ACT_LIMIT, eps)
    assert jnp.allclose(pi, pi_ref, atol=1e-4, rtol=1e-4)
    assert jnp.allclose(logp, logp_ref, atol=1e-4, rtol=1e-4)

    # deterministic path sanity check (eps = 0 -> pi = act_limit * tanh(mu))
    pi_det, _ = squashed_gaussian_actor_forward((img, state), params, ACT_LIMIT,
                                                deterministic=True, with_logprob=False)
    pi_det_ref, _ = actor_ref((img, state), params, ACT_LIMIT,
                              jnp.zeros((B, ACT_DIM), jnp.float32))
    assert jnp.allclose(jax.block_until_ready(pi_det), pi_det_ref, atol=1e-4, rtol=1e-4)

    print("KERNEL_OK")
</pallas_src>

<mosaic_0001>
module attributes {stable_mosaic.version = 11 : i64} {
  func.func @actor_kernel(%arg0: i32, %arg1: memref<15x128xf32, #tpu.memory_space<vmem>>, %arg2: memref<21x15xf32, #tpu.memory_space<vmem>>, %arg3: memref<21x1xf32, #tpu.memory_space<vmem>>, %arg4: memref<32x21xf32, #tpu.memory_space<vmem>>, %arg5: memref<32x1xf32, #tpu.memory_space<vmem>>, %arg6: memref<32x32xf32, #tpu.memory_space<vmem>>, %arg7: memref<32x1xf32, #tpu.memory_space<vmem>>, %arg8: memref<12x32xf32, #tpu.memory_space<vmem>>, %arg9: memref<12x1xf32, #tpu.memory_space<vmem>>, %arg10: memref<7x128xf32, #tpu.memory_space<vmem>>) attributes {dimension_semantics = [#tpu.dimension_semantics<parallel>], iteration_bounds = array<i64: 1>, scalar_prefetch = 0 : i64, scratch_operands = 0 : i64, tpu.core_type = #tpu.core_type<tc>, window_params = [{transform_indices = @transform_0, window_bounds = array<i64: 15, 128>}, {pipeline_mode = #tpu.pipeline_mode<synchronous>, transform_indices = @transform_1, window_bounds = array<i64: 21, 15>}, {pipeline_mode = #tpu.pipeline_mode<synchronous>, transform_indices = @transform_2, window_bounds = array<i64: 21, 1>}, {pipeline_mode = #tpu.pipeline_mode<synchronous>, transform_indices = @transform_3, window_bounds = array<i64: 32, 21>}, {pipeline_mode = #tpu.pipeline_mode<synchronous>, transform_indices = @transform_4, window_bounds = array<i64: 32, 1>}, {pipeline_mode = #tpu.pipeline_mode<synchronous>, transform_indices = @transform_5, window_bounds = array<i64: 32, 32>}, {pipeline_mode = #tpu.pipeline_mode<synchronous>, transform_indices = @transform_6, window_bounds = array<i64: 32, 1>}, {pipeline_mode = #tpu.pipeline_mode<synchronous>, transform_indices = @transform_7, window_bounds = array<i64: 12, 32>}, {pipeline_mode = #tpu.pipeline_mode<synchronous>, transform_indices = @transform_8, window_bounds = array<i64: 12, 1>}, {transform_indices = @transform_9, window_bounds = array<i64: 7, 128>}]} {
    %c0 = arith.constant 0 : index
    %c0_0 = arith.constant 0 : index
    %0 = vector.load %arg1[%c0, %c0_0] : memref<15x128xf32, #tpu.memory_space<vmem>>, vector<15x128xf32>
    %1 = vector.extract_strided_slice %0 {offsets = [0, 0], sizes = [6, 128], strides = [1, 1]} : vector<15x128xf32> to vector<6x128xf32>
    %c0_1 = arith.constant 0 : index
    %c0_2 = arith.constant 0 : index
    %2 = vector.load %arg2[%c0_1, %c0_2] : memref<21x15xf32, #tpu.memory_space<vmem>>, vector<21x15xf32>
    %cst = arith.constant dense<0.000000e+00> : vector<21x128xf32>
    %3 = tpu.matmul %2, %0, %cst {dimension_numbers = #tpu.dot_dimension_numbers<[1], [0], [0], [1], [0, 0, 1, 1], [], []>} : vector<21x15xf32>, vector<15x128xf32>, vector<21x128xf32> -> vector<21x128xf32>
    %c0_3 = arith.constant 0 : index
    %c0_4 = arith.constant 0 : index
    %4 = vector.load %arg3[%c0_3, %c0_4] : memref<21x1xf32, #tpu.memory_space<vmem>>, vector<21x1xf32>
    %5 = vector.broadcast %4 : vector<21x1xf32> to vector<21x128xf32>
    %6 = arith.addf %3, %5 : vector<21x128xf32>
    %7 = math.tanh %6 : vector<21x128xf32>
    %c0_5 = arith.constant 0 : index
    %c0_6 = arith.constant 0 : index
    %8 = vector.load %arg4[%c0_5, %c0_6] : memref<32x21xf32, #tpu.memory_space<vmem>>, vector<32x21xf32>
    %cst_7 = arith.constant dense<0.000000e+00> : vector<32x128xf32>
    %9 = tpu.matmul %8, %7, %cst_7 {dimension_numbers = #tpu.dot_dimension_numbers<[1], [0], [0], [1], [0, 0, 1, 1], [], []>} : vector<32x21xf32>, vector<21x128xf32>, vector<32x128xf32> -> vector<32x128xf32>
    %c0_8 = arith.constant 0 : index
    %c0_9 = arith.constant 0 : index
    %10 = vector.load %arg5[%c0_8, %c0_9] : memref<32x1xf32, #tpu.memory_space<vmem>>, vector<32x1xf32>
    %11 = vector.broadcast %10 : vector<32x1xf32> to vector<32x128xf32>
    %12 = arith.addf %9, %11 : vector<32x128xf32>
    %cst_10 = arith.constant 0.000000e+00 : f32
    %13 = vector.broadcast %cst_10 : f32 to vector<32x128xf32>
    %14 = arith.maximumf %12, %13 : vector<32x128xf32>
    %c0_11 = arith.constant 0 : index
    %c0_12 = arith.constant 0 : index
    %15 = vector.load %arg6[%c0_11, %c0_12] : memref<32x32xf32, #tpu.memory_space<vmem>>, vector<32x32xf32>
    %cst_13 = arith.constant dense<0.000000e+00> : vector<32x128xf32>
    %16 = tpu.matmul %15, %14, %cst_13 {dimension_numbers = #tpu.dot_dimension_numbers<[1], [0], [0], [1], [0, 0, 1, 1], [], []>} : vector<32x32xf32>, vector<32x128xf32>, vector<32x128xf32> -> vector<32x128xf32>
    %c0_14 = arith.constant 0 : index
    %c0_15 = arith.constant 0 : index
    %17 = vector.load %arg7[%c0_14, %c0_15] : memref<32x1xf32, #tpu.memory_space<vmem>>, vector<32x1xf32>
    %18 = vector.broadcast %17 : vector<32x1xf32> to vector<32x128xf32>
    %19 = arith.addf %16, %18 : vector<32x128xf32>
    %cst_16 = arith.constant 0.000000e+00 : f32
    %20 = vector.broadcast %cst_16 : f32 to vector<32x128xf32>
    %21 = arith.maximumf %19, %20 : vector<32x128xf32>
    %c0_17 = arith.constant 0 : index
    %c0_18 = arith.constant 0 : index
    %22 = vector.load %arg8[%c0_17, %c0_18] : memref<12x32xf32, #tpu.memory_space<vmem>>, vector<12x32xf32>
    %cst_19 = arith.constant dense<0.000000e+00> : vector<12x128xf32>
    %23 = tpu.matmul %22, %21, %cst_19 {dimension_numbers = #tpu.dot_dimension_numbers<[1], [0], [0], [1], [0, 0, 1, 1], [], []>} : vector<12x32xf32>, vector<32x128xf32>, vector<12x128xf32> -> vector<12x128xf32>
    %c0_20 = arith.constant 0 : index
    %c0_21 = arith.constant 0 : index
    %24 = vector.load %arg9[%c0_20, %c0_21] : memref<12x1xf32, #tpu.memory_space<vmem>>, vector<12x1xf32>
    %25 = vector.broadcast %24 : vector<12x1xf32> to vector<12x128xf32>
    %26 = arith.addf %23, %25 : vector<12x128xf32>
    %27 = vector.extract_strided_slice %26 {offsets = [0, 0], sizes = [6, 128], strides = [1, 1]} : vector<12x128xf32> to vector<6x128xf32>
    %28 = vector.extract_strided_slice %26 {offsets = [6, 0], sizes = [6, 128], strides = [1, 1]} : vector<12x128xf32> to vector<6x128xf32>
    %cst_22 = arith.constant -2.000000e+01 : f32
    %cst_23 = arith.constant 2.000000e+00 : f32
    %29 = vector.broadcast %cst_22 : f32 to vector<6x128xf32>
    %30 = arith.maximumf %29, %28 : vector<6x128xf32>
    %31 = vector.broadcast %cst_23 : f32 to vector<6x128xf32>
    %32 = arith.minimumf %31, %30 : vector<6x128xf32>
    %33 = math.exp %32 : vector<6x128xf32>
    %34 = arith.mulf %33, %1 : vector<6x128xf32>
    %35 = arith.addf %27, %34 : vector<6x128xf32>
    %cst_24 = arith.constant -5.000000e-01 : f32
    %36 = vector.broadcast %cst_24 : f32 to vector<6x128xf32>
    %37 = arith.mulf %36, %1 : vector<6x128xf32>
    %38 = arith.mulf %37, %1 : vector<6x128xf32>
    %39 = arith.subf %38, %32 : vector<6x128xf32>
    %cst_25 = arith.constant 0.918938517 : f32
    %40 = vector.broadcast %cst_25 : f32 to vector<6x128xf32>
    %41 = arith.subf %39, %40 : vector<6x128xf32>
    %cst_26 = arith.constant 0.693147182 : f32
    %42 = vector.broadcast %cst_26 : f32 to vector<6x128xf32>
    %43 = arith.subf %42, %35 : vector<6x128xf32>
    %cst_27 = arith.constant -2.000000e+00 : f32
    %44 = vector.broadcast %cst_27 : f32 to vector<6x128xf32>
    %45 = arith.mulf %44, %35 : vector<6x128xf32>
    %cst_28 = arith.constant 0.000000e+00 : f32
    %46 = vector.broadcast %cst_28 : f32 to vector<6x128xf32>
    %47 = arith.maximumf %45, %46 : vector<6x128xf32>
    %48 = math.absf %45 : vector<6x128xf32>
    %cst_29 = arith.constant 0.000000e+00 : f32
    %49 = vector.broadcast %cst_29 : f32 to vector<6x128xf32>
    %50 = arith.subf %49, %48 : vector<6x128xf32>
    %51 = math.exp %50 : vector<6x128xf32>
    %52 = math.log1p %51 : vector<6x128xf32>
    %53 = arith.addf %47, %52 : vector<6x128xf32>
    %54 = arith.subf %43, %53 : vector<6x128xf32>
    %cst_30 = arith.constant 2.000000e+00 : f32
    %55 = vector.broadcast %cst_30 : f32 to vector<6x128xf32>
    %56 = arith.mulf %55, %54 : vector<6x128xf32>
    %57 = arith.subf %41, %56 : vector<6x128xf32>
    %cst_31 = arith.constant dense<0.000000e+00> : vector<128xf32>
    %58 = vector.multi_reduction <add>, %57, %cst_31 [0] : vector<6x128xf32> to vector<128xf32>
    %59 = vector.shape_cast %58 : vector<128xf32> to vector<1x128xf32>
    %60 = math.tanh %35 : vector<6x128xf32>
    %cst_32 = arith.constant 1.000000e+00 : f32
    %61 = vector.broadcast %cst_32 : f32 to vector<6x128xf32>
    %62 = arith.mulf %61, %60 : vector<6x128xf32>
    %c0_33 = arith.constant 0 : index
    %c0_34 = arith.constant 0 : index
    %63 = vector.load %arg10[%c0_33, %c0_34] : memref<7x128xf32, #tpu.memory_space<vmem>>, vector<6x128xf32>
    tpu.vector_store %arg10[%c0_33, %c0_34], %62 {strides = array<i32>} : memref<7x128xf32, #tpu.memory_space<vmem>>, vector<6x128xf32>,
    %c6 = arith.constant 6 : index
    %c0_35 = arith.constant 0 : index
    %64 = vector.load %arg10[%c6, %c0_35] : memref<7x128xf32, #tpu.memory_space<vmem>>, vector<1x128xf32>
    tpu.vector_store %arg10[%c6, %c0_35], %59 {strides = array<i32>} : memref<7x128xf32, #tpu.memory_space<vmem>>, vector<1x128xf32>,
    return
  }
  func.func @transform_0(%arg0: i32) -> (i32, i32) {
    %c0_i32 = arith.constant 0 : i32
    %c0_i32_0 = arith.constant 0 : i32
    return %c0_i32, %arg0 : i32, i32
  }
  func.func @transform_1(%arg0: i32) -> (i32, i32) {
    %c0_i32 = arith.constant 0 : i32
    %c0_i32_0 = arith.constant 0 : i32
    %c0_i32_1 = arith.constant 0 : i32
    return %c0_i32, %c0_i32_0 : i32, i32
  }
  func.func @transform_2(%arg0: i32) -> (i32, i32) {
    %c0_i32 = arith.constant 0 : i32
    %c0_i32_0 = arith.constant 0 : i32
    %c0_i32_1 = arith.constant 0 : i32
    return %c0_i32, %c0_i32_0 : i32, i32
  }
  func.func @transform_3(%arg0: i32) -> (i32, i32) {
    %c0_i32 = arith.constant 0 : i32
    %c0_i32_0 = arith.constant 0 : i32
    %c0_i32_1 = arith.constant 0 : i32
    return %c0_i32, %c0_i32_0 : i32, i32
  }
  func.func @transform_4(%arg0: i32) -> (i32, i32) {
    %c0_i32 = arith.constant 0 : i32
    %c0_i32_0 = arith.constant 0 : i32
    %c0_i32_1 = arith.constant 0 : i32
    return %c0_i32, %c0_i32_0 : i32, i32
  }
  func.func @transform_5(%arg0: i32) -> (i32, i32) {
    %c0_i32 = arith.constant 0 : i32
    %c0_i32_0 = arith.constant 0 : i32
    %c0_i32_1 = arith.constant 0 : i32
    return %c0_i32, %c0_i32_0 : i32, i32
  }
  func.func @transform_6(%arg0: i32) -> (i32, i32) {
    %c0_i32 = arith.constant 0 : i32
    %c0_i32_0 = arith.constant 0 : i32
    %c0_i32_1 = arith.constant 0 : i32
    return %c0_i32, %c0_i32_0 : i32, i32
  }
  func.func @transform_7(%arg0: i32) -> (i32, i32) {
    %c0_i32 = arith.constant 0 : i32
    %c0_i32_0 = arith.constant 0 : i32
    %c0_i32_1 = arith.constant 0 : i32
    return %c0_i32, %c0_i32_0 : i32, i32
  }
  func.func @transform_8(%arg0: i32) -> (i32, i32) {
    %c0_i32 = arith.constant 0 : i32
    %c0_i32_0 = arith.constant 0 : i32
    %c0_i32_1 = arith.constant 0 : i32
    return %c0_i32, %c0_i32_0 : i32, i32
  }
  func.func @transform_9(%arg0: i32) -> (i32, i32) {
    %c0_i32 = arith.constant 0 : i32
    %c0_i32_0 = arith.constant 0 : i32
    return %c0_i32, %arg0 : i32, i32
  }
}

</mosaic_0001>

<llo_original>
// kernel: tpu_custom_call.1
$region0: #{tpu_custom_call.1}
  #allocation0 [shape = 'u32[]', space=smem, size = 0x4, offset = 0x4, fixed_abs, tag = 'smem constant byte address 0x4 - core index']
  #allocation1 [shape = 'u32[72,128]{1,0:T(1,128)}', space=vmem, size = 0x9000, scoped, tag = 'internal scratch']
  %s0 = inlined_call_operand.vmem [shape: f32[15,128], index: 0, kind: input, shape index: {}]
  %s1 = inlined_call_operand.vmem [shape: f32[21,15], index: 1, kind: input, shape index: {}]
  %s2 = inlined_call_operand.vmem [shape: f32[21,1], index: 2, kind: input, shape index: {}]
  %s3 = inlined_call_operand.vmem [shape: f32[32,21], index: 3, kind: input, shape index: {}]
  %s4 = inlined_call_operand.vmem [shape: f32[32,1], index: 4, kind: input, shape index: {}]
  %s5 = inlined_call_operand.vmem [shape: f32[32,32], index: 5, kind: input, shape index: {}]
  %s6 = inlined_call_operand.vmem [shape: f32[32,1], index: 6, kind: input, shape index: {}]
  %s7 = inlined_call_operand.vmem [shape: f32[12,32], index: 7, kind: input, shape index: {}]
  %s8 = inlined_call_operand.vmem [shape: f32[12,1], index: 8, kind: input, shape index: {}]
  %s9 = inlined_call_operand.hbm [shape: f32[7,128], index: 9, kind: output, shape index: {}]
  %s10 = sld [smem:[#allocation0]]
  $region46: #{tpu_custom_call.1} parent=0
    _
  %s12 = ssub.s32 1, %s10
  %s13 = scalar_select 0, %s12, %s10
  $region1: #{tpu_custom_call.1} parent=0
    #allocation2 [shape = 'u8[4096]{0}', space=vmem, size = 0x1000, scoped, tag = 'output window, operand 0, single buffered']
    #allocation3 [shape = 's32[1]{0}', space=sflag, size = 0x4, scoped, tag = 'scoped memory for tpu_custom_call.1']
    %14 = vsyncpa [#allocation3], 0
    // Predicated region
    $region2: #{tpu_custom_call.1} parent=1 // pred_check
      _
    $region3: #{tpu_custom_call.1} parent=1 // pred_check_branch
      %16 = sbr.rel (0) target = $region5
    $region4: #{tpu_custom_call.1} parent=1 // pred_region
      _
    $region5: #{tpu_custom_call.1} parent=1 // pred_fallthru
      _
    // Predicated region
    $region6: #{tpu_custom_call.1} parent=1 // pred_check
      _
    $region7: #{tpu_custom_call.1} parent=1 // pred_check_branch
      %18 = sbr.rel (0) target = $region9
    $region8: #{tpu_custom_call.1} parent=1 // pred_region
      _
    $region9: #{tpu_custom_call.1} parent=1 // pred_fallthru
      _
    // Predicated region
    $region10: #{tpu_custom_call.1} parent=1 // pred_check
      _
    $region11: #{tpu_custom_call.1} parent=1 // pred_check_branch
      %20 = sbr.rel (0) target = $region13
    $region12: #{tpu_custom_call.1} parent=1 // pred_region
      _
    $region13: #{tpu_custom_call.1} parent=1 // pred_fallthru
      _
    // Predicated region
    $region14: #{tpu_custom_call.1} parent=1 // pred_check
      _
    $region15: #{tpu_custom_call.1} parent=1 // pred_check_branch
      %22 = sbr.rel (0) target = $region17
    $region16: #{tpu_custom_call.1} parent=1 // pred_region
      _
    $region17: #{tpu_custom_call.1} parent=1 // pred_fallthru
      _
    // Predicated region
    $region18: #{tpu_custom_call.1} parent=1 // pred_check
      _
    $region19: #{tpu_custom_call.1} parent=1 // pred_check_branch
      %24 = sbr.rel (0) target = $region21
    $region20: #{tpu_custom_call.1} parent=1 // pred_region
      _
    $region21: #{tpu_custom_call.1} parent=1 // pred_fallthru
      _
    // Predicated region
    $region22: #{tpu_custom_call.1} parent=1 // pred_check
      _
    $region23: #{tpu_custom_call.1} parent=1 // pred_check_branch
      %26 = sbr.rel (0) target = $region25
    $region24: #{tpu_custom_call.1} parent=1 // pred_region
      _
    $region25: #{tpu_custom_call.1} parent=1 // pred_fallthru
      _
    // Predicated region
    $region26: #{tpu_custom_call.1} parent=1 // pred_check
      _
    $region27: #{tpu_custom_call.1} parent=1 // pred_check_branch
      %28 = sbr.rel (0) target = $region29
    $region28: #{tpu_custom_call.1} parent=1 // pred_region
      _
    $region29: #{tpu_custom_call.1} parent=1 // pred_fallthru
      _
    // Predicated region
    $region30: #{tpu_custom_call.1} parent=1 // pred_check
      _
    $region31: #{tpu_custom_call.1} parent=1 // pred_check_branch
      %30 = sbr.rel (0) target = $region33
    $region32: #{tpu_custom_call.1} parent=1 // pred_region
      _
    $region33: #{tpu_custom_call.1} parent=1 // pred_fallthru
      _
    // Predicated region
    $region34: #{tpu_custom_call.1} parent=1 // pred_check
      _
    $region35: #{tpu_custom_call.1} parent=1 // pred_check_branch
      %32 = sbr.rel (0) target = $region37
    $region36: #{tpu_custom_call.1} parent=1 // pred_region
      _
    $region37: #{tpu_custom_call.1} parent=1 // pred_fallthru
      _
    %v33 = vld [vmem:[%s0] sm:$0xff]
    %v34 = vld [vmem:[%s0 + $0x8] sm:$0x7f]
    %v35 = vld [vmem:[%s1] sm:$0xff]
    %v36 = vld [vmem:[%s1 + $0x8] sm:$0xff]
    %v37 = vld [vmem:[%s1 + $0x10] sm:$0x1f]
    %v38 = vld [vmem:[%s2] sm:$0xff]
    %v39 = vld [vmem:[%s2 + $0x8] sm:$0xff]
    %v40 = vld [vmem:[%s2 + $0x10] sm:$0x1f]
    %42 = vset.pattern.permute.xlu0 0
    %43 = vperm.xlu0 %42, %v38
    %v44 = vpop.permute.xlu0 %43
    %47 = vset.pattern.permute.xlu0 0
    %48 = vperm.xlu0 %47, %v39
    %v49 = vpop.permute.xlu0 %48
    %52 = vset.pattern.permute.xlu0 0
    %53 = vperm.xlu0 %52, %v40
    %v54 = vpop.permute.xlu0 %53
    %vm56 = vcmask 121856
    %v58 = vsel %vm56, %v35, 0
    %v61 = vsel %vm56, %v36, 0
    %v64 = vsel %vm56, %v37, 0
    %vm66 = vcmask 1046528
    %v68 = vsel %vm66, %v34, 0
    %70 = vmatpush.msra.mxu0 0.0
    %71 = vmatpush.msra.mxu0 0.0
    %72 = vmatpush.msra.mxu0 0.0
    %73 = vmatpush.msra.mxu0 0.0
    %74 = vmatpush.msra.mxu0 0.0
    %75 = vmatpush.msra.mxu0 0.0
    %76 = vmatpush.msra.mxu0 0.0
    %77 = vmatpush.msra.mxu0 0.0
    %78 = vmatpush.msra.mxu0 0.0
    %79 = vmatpush.msra.mxu0 0.0
    %80 = vmatpush.msra.mxu0 0.0
    %81 = vmatpush.msra.mxu0 0.0
    %82 = vmatpush.msra.mxu0 0.0
    %83 = vmatpush.msra.mxu0 0.0
    %84 = vmatpush.msra.mxu0 %v68
    %85 = vmatpush.msra.mxu0 %v33
    %86 = vmatmul.f32.gmra.mxu0 %v58
    %v87 = vpop.f32.mrf.mxu0
    %v88 = vadd.f32 %v44, %v87
    %89 = vmatmul.f32.gmra.mxu0 %v61
    %v90 = vpop.f32.mrf.mxu0
    %v91 = vadd.f32 %v49, %v90
    %92 = vmatmul.f32.gmra.mxu0 %v64
    %v93 = vpop.f32.mrf.mxu0
    %v94 = vadd.f32 %v54, %v93
    %95 = vdwg.mxu0
    %v96 = vtanh.pop %v88
    %v97 = vtanh.pop %v91
    %v98 = vtanh.pop %v94
    %v99 = vld [vmem:[%s3] sm:$0xff]
    %v100 = vld [vmem:[%s3 + $0x8] sm:$0xff]
    %v101 = vld [vmem:[%s3 + $0x10] sm:$0xff]
    %v102 = vld [vmem:[%s3 + $0x18] sm:$0xff]
    %v103 = vld [vmem:[%s4] sm:$0xff]
    %v104 = vld [vmem:[%s4 + $0x8] sm:$0xff]
    %v105 = vld [vmem:[%s4 + $0x10] sm:$0xff]
    %v106 = vld [vmem:[%s4 + $0x18] sm:$0xff]
    %108 = vset.pattern.permute.xlu0 0
    %109 = vperm.xlu0 %108, %v103
    %v110 = vpop.permute.xlu0 %109
    %113 = vset.pattern.permute.xlu0 0
    %114 = vperm.xlu0 %113, %v104
    %v115 = vpop.permute.xlu0 %114
    %118 = vset.pattern.permute.xlu0 0
    %119 = vperm.xlu0 %118, %v105
    %v120 = vpop.permute.xlu0 %119
    %123 = vset.pattern.permute.xlu0 0
    %124 = vperm.xlu0 %123, %v106
    %v125 = vpop.permute.xlu0 %124
    %vm127 = vcmask 171008
    %v129 = vsel %vm127, %v99, 0
    %v132 = vsel %vm127, %v100, 0
    %v135 = vsel %vm127, %v101, 0
    %v138 = vsel %vm127, %v102, 0
    %vm140 = vcmask 1044480
    %v142 = vsel %vm140, %v98, 0
    %144 = vmatpush.msra.mxu0 0.0
    %145 = vmatpush.msra.mxu0 0.0
    %146 = vmatpush.msra.mxu0 0.0
    %147 = vmatpush.msra.mxu0 0.0
    %148 = vmatpush.msra.mxu0 0.0
    %149 = vmatpush.msra.mxu0 0.0
    %150 = vmatpush.msra.mxu0 0.0
    %151 = vmatpush.msra.mxu0 0.0
    %152 = vmatpush.msra.mxu0 0.0
    %153 = vmatpush.msra.mxu0 0.0
    %154 = vmatpush.msra.mxu0 0.0
    %155 = vmatpush.msra.mxu0 0.0
    %156 = vmatpush.msra.mxu0 0.0
    %157 = vmatpush.msra.mxu0 %v142
    %158 = vmatpush.msra.mxu0 %v97
    %159 = vmatpush.msra.mxu0 %v96
    %160 = vmatmul.f32.gmra.mxu0 %v129
    %v161 = vpop.f32.mrf.mxu0
    %v162 = vadd.f32 %v110, %v161
    %163 = vmatmul.f32.gmra.mxu0 %v132
    %v164 = vpop.f32.mrf.mxu0
    %v165 = vadd.f32 %v115, %v164
    %166 = vmatmul.f32.gmra.mxu0 %v135
    %v167 = vpop.f32.mrf.mxu0
    %v168 = vadd.f32 %v120, %v167
    %169 = vmatmul.f32.gmra.mxu0 %v138
    %v170 = vpop.f32.mrf.mxu0
    %v171 = vadd.f32 %v125, %v170
    %172 = vdwg.mxu0
    %v173 = vmax.f32 %v162, 0.0
    %v174 = vmax.f32 %v165, 0.0
    %v175 = vmax.f32 %v168, 0.0
    %v176 = vmax.f32 %v171, 0.0
    %v177 = vld [vmem:[%s5] sm:$0xff]
    %v178 = vld [vmem:[%s5 + $0x8] sm:$0xff]
    %v179 = vld [vmem:[%s5 + $0x10] sm:$0xff]
    %v180 = vld [vmem:[%s5 + $0x18] sm:$0xff]
    %v181 = vld [vmem:[%s6] sm:$0xff]
    %v182 = vld [vmem:[%s6 + $0x8] sm:$0xff]
    %v183 = vld [vmem:[%s6 + $0x10] sm:$0xff]
    %v184 = vld [vmem:[%s6 + $0x18] sm:$0xff]
    %186 = vset.pattern.permute.xlu0 0
    %187 = vperm.xlu0 %186, %v181
    %v188 = vpop.permute.xlu0 %187
    %191 = vset.pattern.permute.xlu0 0
    %192 = vperm.xlu0 %191, %v182
    %v193 = vpop.permute.xlu0 %192
    %196 = vset.pattern.permute.xlu0 0
    %197 = vperm.xlu0 %196, %v183
    %v198 = vpop.permute.xlu0 %197
    %201 = vset.pattern.permute.xlu0 0
    %202 = vperm.xlu0 %201, %v184
    %v203 = vpop.permute.xlu0 %202
    %vm205 = vcmask 261120
    %v207 = vsel %vm205, %v177, 0
    %v210 = vsel %vm205, %v178, 0
    %v213 = vsel %vm205, %v179, 0
    %v216 = vsel %vm205, %v180, 0
    %218 = vmatpush.msra.mxu0 0.0
    %219 = vmatpush.msra.mxu0 0.0
    %220 = vmatpush.msra.mxu0 0.0
    %221 = vmatpush.msra.mxu0 0.0
    %222 = vmatpush.msra.mxu0 0.0
    %223 = vmatpush.msra.mxu0 0.0
    %224 = vmatpush.msra.mxu0 0.0
    %225 = vmatpush.msra.mxu0 0.0
    %226 = vmatpush.msra.mxu0 0.0
    %227 = vmatpush.msra.mxu0 0.0
    %228 = vmatpush.msra.mxu0 0.0
    %229 = vmatpush.msra.mxu0 0.0
    %230 = vmatpush.msra.mxu0 %v176
    %231 = vmatpush.msra.mxu0 %v175
    %232 = vmatpush.msra.mxu0 %v174
    %233 = vmatpush.msra.mxu0 %v173
    %234 = vmatmul.f32.gmra.mxu0 %v207
    %v235 = vpop.f32.mrf.mxu0
    %v236 = vadd.f32 %v188, %v235
    %237 = vmatmul.f32.gmra.mxu0 %v210
    %v238 = vpop.f32.mrf.mxu0
    %v239 = vadd.f32 %v193, %v238
    %240 = vmatmul.f32.gmra.mxu0 %v213
    %v241 = vpop.f32.mrf.mxu0
    %v242 = vadd.f32 %v198, %v241
    %243 = vmatmul.f32.gmra.mxu0 %v216
    %v244 = vpop.f32.mrf.mxu0
    %v245 = vadd.f32 %v203, %v244
    %246 = vdwg.mxu0
    %v247 = vmax.f32 %v236, 0.0
    %v248 = vmax.f32 %v239, 0.0
    %v249 = vmax.f32 %v242, 0.0
    %v250 = vmax.f32 %v245, 0.0
    %v251 = vld [vmem:[%s7] sm:$0xff]
    %v252 = vld [vmem:[%s7 + $0x8] sm:$0xf]
    %v253 = vld [vmem:[%s8] sm:$0xff]
    %v254 = vld [vmem:[%s8 + $0x8] sm:$0xf]
    %256 = vset.pattern.permute.xlu0 0
    %257 = vperm.xlu0 %256, %v253
    %v258 = vpop.permute.xlu0 %257
    %261 = vset.pattern.permute.xlu0 0
    %262 = vperm.xlu0 %261, %v254
    %v263 = vpop.permute.xlu0 %262
    %v266 = vsel %vm205, %v251, 0
    %v269 = vsel %vm205, %v252, 0
    %271 = vmatpush.msra.mxu0 0.0
    %272 = vmatpush.msra.mxu0 0.0
    %273 = vmatpush.msra.mxu0 0.0
    %274 = vmatpush.msra.mxu0 0.0
    %275 = vmatpush.msra.mxu0 0.0
    %276 = vmatpush.msra.mxu0 0.0
    %277 = vmatpush.msra.mxu0 0.0
    %278 = vmatpush.msra.mxu0 0.0
    %279 = vmatpush.msra.mxu0 0.0
    %280 = vmatpush.msra.mxu0 0.0
    %281 = vmatpush.msra.mxu0 0.0
    %282 = vmatpush.msra.mxu0 0.0
    %283 = vmatpush.msra.mxu0 %v250
    %284 = vmatpush.msra.mxu0 %v249
    %285 = vmatpush.msra.mxu0 %v248
    %286 = vmatpush.msra.mxu0 %v247
    %287 = vmatmul.f32.gmra.mxu0 %v266
    %v288 = vpop.f32.mrf.mxu0
    %v289 = vadd.f32 %v258, %v288
    %290 = vmatmul.f32.gmra.mxu0 %v269
    %v291 = vpop.f32.mrf.mxu0
    %v292 = vadd.f32 %v263, %v291
    %293 = vdwg.mxu0
    %v294 = vmax.f32 %v289, -20.0
    %v295 = vmax.f32 %v292, -20.0
    %v296 = vmin.f32 %v294, 2.0
    %v297 = vmin.f32 %v295, 2.0
    %v298 = vmul.f32 %v296, 1.442695
    %v299 = vpow.pop %v298
    %v300 = vmul.f32 %v297, 1.442695
    %v301 = vpow.pop %v300
    %v303 = vrot.slane %v33, 2
    %v305 = vmul.f32 %v299, %v303
    %v306 = vmul.f32 %v301, %v303
    %vm309 = vcmask 1041408
    %v310 = vrot.slane %v305, 6
    %v311 = vrot.slane %v306, 6
    %v312 = vsel %vm309, %v310, %v311
    %v314 = vadd.f32 %v289, %v312
    %v315 = vmul.f32 %v33, -0.5
    %v316 = vmul.f32 %v315, %v33
    %v319 = vrot.slane %v296, 6
    %v320 = vrot.slane %v297, 6
    %v321 = vsel %vm309, %v319, %v320
    %v323 = vsub.f32 %v316, %v321
    %v324 = vsub.f32 %v323, 0.9189385
    %v325 = vsub.f32 0.6931472, %v314
    %v326 = vmul.f32 %v314, -2.0
    %v327 = vmax.f32 %v326, 0.0
    %v328 = vand.u32 2147483647, %v326
    %v329 = vsub.f32 0.0, %v328
    %v330 = vmul.f32 %v329, 1.442695
    %v331 = vpow.pop %v330
    %v332 = vadd.f32 %v331, 1.0
    %v333 = vlog2.pop %v332
    %v334 = vmul.f32 %v333, 0.6931472
    %v335 = vmul.f32 -0.5, %v331
    %v336 = vadd.f32 %v335, 1.0
    %v337 = vmul.f32 %v336, %v331
    %v338 = vand.u32 2147483647, %v331
    %vm339 = vcmp.lt.f32.partialorder %v338, 0.0004427343
    %v340 = vsel %vm339, %v337, %v334
    %v341 = vadd.f32 %v327, %v340
    %v342 = vsub.f32 %v325, %v341
    %v343 = vmul.f32 %v342, 2.0
    %v344 = vsub.f32 %v324, %v343
    %vm345 = vcmask 1045504
    %v346 = vsel %vm345, %v344, 0.0
    %v347 = vrot.slane %v346, 4
    %v348 = vadd.f32 %v346, %v347
    %v349 = vrot.slane %v348, 2
    %v350 = vadd.f32 %v348, %v349
    %v351 = vrot.slane %v350, 1
    %v352 = vadd.f32 %v350, %v351
    %v353 = vtanh.pop %v314
    %354 = vst [vmem:[#allocation2] sm:$0x3f] %v353
    %355 = vst [vmem:[#allocation2 + $0x6] sm:$0x1] %v352
    // Predicated region
    $region38: #{tpu_custom_call.1} parent=1 // pred_check
      _
    $region39: #{tpu_custom_call.1} parent=1 // pred_check_branch
      %357 = sbr.rel (0) target = $region41
    $region40: #{tpu_custom_call.1} parent=1 // pred_region
      %359 = vsyncadd [#allocation3], 0
      %s361 = sshll.u32 [#allocation2], 4
      %s362 = int_to_ptr.vmem [resolvable:$true] %s361
      %s363 = sshll.u32 %s9, 4
      %s364 = int_to_ptr.hbm [resolvable:$true] %s363
      %366 = dma.vmem_to_hbm [thread:$0]  %s362, 128, %s364, [#allocation3]
    $region41: #{tpu_custom_call.1} parent=1 // pred_fallthru
      _
    // Predicated region
    $region42: #{tpu_custom_call.1} parent=1 // pred_check
      _
    $region43: #{tpu_custom_call.1} parent=1 // pred_check_branch
      %368 = sbr.rel (0) target = $region45
    $region44: #{tpu_custom_call.1} parent=1 // pred_region
      %370 = dma.done [#allocation3], 128
    $region45: #{tpu_custom_call.1} parent=1 // pred_fallthru
      _
    %371 = vsyncpa [#allocation3], 1

</llo_original>
